<compile_context>
chip_gen: v7x
topology: tpu7x:2x2x1
jax: 0.10.0
libtpu: 0.0.40
codegen_flags: <defaults>
</compile_context>

<pallas_src>
import functools
import math

import jax
import jax.numpy as jnp
from jax import lax
from jax.experimental import pallas as pl
from jax.experimental.pallas import tpu as pltpu


def _round_up(x, m):
    return ((x + m - 1) // m) * m


# ----------------------------------------------------------------------------
# Pallas kernel: one M-tile of  (M, K) @ (K, Ep) + (1, Ep) -> (M, Ep)
# ----------------------------------------------------------------------------
def _proj_kernel(a_ref, w_ref, b_ref, o_ref):
    acc = jnp.dot(a_ref[...], w_ref[...], preferred_element_type=jnp.float32)
    o_ref[...] = (acc + b_ref[...]).astype(o_ref.dtype)


def _proj_matmul(patches, weight, bias, *, block_m=None, out_dtype=jnp.float32):
    """patches: (M, K) bf16, weight: (K, Ep) bf16, bias: (1, Ep) f32.

    Returns (M, Ep) in out_dtype. Ep must be a multiple of 128.
    """
    M, K = patches.shape
    Kw, Ep = weight.shape
    assert Kw == K and Ep % 128 == 0

    if block_m is None:
        block_m = 1024  # multiple of 256 (MXU width on v6e/v7x)

    if M <= block_m:
        tm = M  # single block; full-extent dims are always legal
    else:
        # bf16 inputs -> sublane tile of 16; keep tm a multiple of 16.
        tm = max(16, (block_m // 16) * 16)

    grid = (pl.cdiv(M, tm),)

    # VMEM budget: double-buffered A/O tiles + resident W/bias, with margin.
    bytes_a = 2 * tm * K * patches.dtype.itemsize
    bytes_o = 2 * tm * Ep * jnp.dtype(out_dtype).itemsize
    bytes_w = 2 * K * Ep * weight.dtype.itemsize
    bytes_b = 2 * Ep * bias.dtype.itemsize
    vmem_limit = int(min(48 << 20,
                         max(8 << 20, 2 * (bytes_a + bytes_o + bytes_w + bytes_b))))

    return pl.pallas_call(
        _proj_kernel,
        out_shape=jax.ShapeDtypeStruct((M, Ep), out_dtype),
        grid=grid,
        in_specs=[
            pl.BlockSpec((tm, K), lambda i: (i, 0)),   # A: streamed over M
            pl.BlockSpec((K, Ep), lambda i: (0, 0)),   # W: resident in VMEM
            pl.BlockSpec((1, Ep), lambda i: (0, 0)),   # bias: resident
        ],
        out_specs=pl.BlockSpec((tm, Ep), lambda i: (i, 0)),
        compiler_params=pltpu.CompilerParams(
            dimension_semantics=("parallel",),
            vmem_limit_bytes=vmem_limit,
        ),
    )(patches, weight, bias)


# ----------------------------------------------------------------------------
# Patch extraction (XLA glue)
# ----------------------------------------------------------------------------
def _extract_patches(x, ks, stride):
    """x: (N, C, Hp, Wp) -> ((N*Ho*Wo, C*ks*ks), Ho, Wo)."""
    N, C, Hp, Wp = x.shape
    Ho = (Hp - ks) // stride + 1
    Wo = (Wp - ks) // stride + 1
    if ks == stride and Hp == Ho * ks and Wp == Wo * ks:
        # Non-overlapping patches: a single reshape + transpose.
        # TODO(synk): fuse this extraction into the kernel (BlockSpec over
        # N/Ho rows of x) so x is read from HBM exactly once.
        p = x.reshape(N, C, Ho, ks, Wo, ks)
        p = jnp.transpose(p, (0, 2, 4, 1, 3, 5))        # (N, Ho, Wo, C, ks, ks)
    else:
        # General (overlapping) case.
        rows = []
        for ki in range(ks):
            cols = []
            for kj in range(ks):
                cols.append(x[:, :, ki:ki + Ho * stride:stride,
                                    kj:kj + Wo * stride:stride])  # (N, C, Ho, Wo)
            rows.append(jnp.stack(cols, axis=-1))        # (N, C, Ho, Wo, ks)
        p = jnp.stack(rows, axis=-2)                     # (N, C, Ho, Wo, ks, ks)
        p = jnp.transpose(p, (0, 2, 3, 1, 4, 5))         # (N, Ho, Wo, C, ks, ks)
    return p.reshape(N * Ho * Wo, C * ks * ks), Ho, Wo


# ----------------------------------------------------------------------------
# Forward pass
# ----------------------------------------------------------------------------
@functools.partial(jax.jit, static_argnames=("patch_size", "kernel_size", "block_m"))
def patch_embed_forward(x, weight, bias, *, patch_size, kernel_size=None,
                        block_m=None):
    """x: (N, C, H, W) f32, weight: (E, C, ks, ks), bias: (E,) -> (N, E, Ho, Wo)."""
    if kernel_size is None:
        kernel_size = patch_size
    ks, stride = kernel_size, patch_size
    pad = (ks - stride + 1) // 2
    E, C, _, _ = weight.shape
    N = x.shape[0]

    if pad > 0:
        x = jnp.pad(x, ((0, 0), (0, 0), (pad, pad), (pad, pad)), mode="reflect")

    patches, Ho, Wo = _extract_patches(x, ks, stride)    # (M, K)
    K = C * ks * ks

    # Weight (E, C, ks, ks) -> (K, E); pad only E (tiny) to the lane width.
    Ep = _round_up(E, 128)
    w_mat = weight.reshape(E, K).T
    if Ep != E:
        w_mat = jnp.zeros((K, Ep), w_mat.dtype).at[:, :E].set(w_mat)
        b_row = jnp.zeros((1, Ep), jnp.float32).at[0, :E].set(bias.astype(jnp.float32))
    else:
        b_row = bias.reshape(1, E).astype(jnp.float32)

    # Hot path on the MXU (bf16 operands, f32 accumulation).
    out = _proj_matmul(patches.astype(jnp.bfloat16),
                       w_mat.astype(jnp.bfloat16),
                       b_row, block_m=block_m)           # (M, Ep) f32

    out = out.reshape(N, Ho, Wo, Ep)[..., :E]
    # TODO(synk): if the consumer accepts NHWC / (N, Ho*Wo, E), drop this
    # transpose (it is one extra HBM pass over the output).
    return jnp.transpose(out, (0, 3, 1, 2))              # NCHW


class PatchEmbed:
    def __init__(self, patch_size=4, in_chans=3, embed_dim=96,
                 kernel_size=None, *, key):
        self.in_chans = in_chans
        self.embed_dim = embed_dim
        self.patch_size = patch_size
        if kernel_size is None:
            kernel_size = patch_size
        self.kernel_size = kernel_size

        # PyTorch Conv2d default init: kaiming_uniform_(a=sqrt(5)) gives
        # weight bound = 1/sqrt(fan_in); bias bound = 1/sqrt(fan_in).
        k_w, k_b = jax.random.split(key)
        fan_in = in_chans * kernel_size * kernel_size
        bound = 1.0 / math.sqrt(fan_in)
        self.weight = jax.random.uniform(
            k_w, (embed_dim, in_chans, kernel_size, kernel_size),
            jnp.float32, -bound, bound)
        self.bias = jax.random.uniform(
            k_b, (embed_dim,), jnp.float32, -bound, bound)

    def __call__(self, x, block_m=None):
        return patch_embed_forward(x, self.weight, self.bias,
                                   patch_size=self.patch_size,
                                   kernel_size=self.kernel_size,
                                   block_m=block_m)


# ----------------------------------------------------------------------------
if __name__ == "__main__":
    key = jax.random.PRNGKey(0)
    k_param, k_x = jax.random.split(key)

    N, C, H, W = 2, 4, 16, 16
    patch_size, embed_dim = 4, 32

    module = PatchEmbed(patch_size=patch_size, in_chans=C,
                        embed_dim=embed_dim, key=k_param)
    x = jax.random.normal(k_x, (N, C, H, W), jnp.float32)

    y = jax.block_until_ready(module(x))
    assert y.shape == (N, embed_dim, H // patch_size, W // patch_size)

    # Reference: exact f32 conv on bf16-rounded operands (matches the kernel's
    # bf16 inputs + f32 accumulation).
    def ref_conv(xr):
        xr = xr.astype(jnp.bfloat16).astype(jnp.float32)
        wr = module.weight.astype(jnp.bfloat16).astype(jnp.float32)
        yr = lax.conv_general_dilated(
            xr, wr, window_strides=(patch_size, patch_size),
            padding=[(0, 0), (0, 0)],
            dimension_numbers=("NCHW", "OIHW", "NCHW"),
            precision=lax.Precision.HIGHEST)
        return yr + module.bias[None, :, None, None]

    y_ref = ref_conv(x)
    assert jnp.allclose(y, y_ref, atol=1e-3, rtol=1e-3)

    # Exercise the multi-block (gridded, pipelined) path with a forced tile.
    y_tiled = jax.block_until_ready(module(x, block_m=16))   # M=32 -> grid=2
    assert jnp.allclose(y_tiled, y_ref, atol=1e-3, rtol=1e-3)

    # Exercise the ragged final tile (M=48 rows, tile of 32 -> masked tail).
    x3 = jax.random.normal(jax.random.PRNGKey(1), (3, C, H, W), jnp.float32)
    y3 = jax.block_until_ready(module(x3, block_m=32))
    assert jnp.allclose(y3, ref_conv(x3), atol=1e-3, rtol=1e-3)

    print("KERNEL_OK")
</pallas_src>

<mosaic_0001>
module attributes {stable_mosaic.version = 11 : i64} {
  func.func @_proj_kernel(%arg0: i32, %arg1: memref<32x64xbf16, #tpu.memory_space<vmem>>, %arg2: memref<64x128xbf16, #tpu.memory_space<vmem>>, %arg3: memref<1x128xf32, #tpu.memory_space<vmem>>, %arg4: memref<32x128xf32, #tpu.memory_space<vmem>>) attributes {dimension_semantics = [#tpu.dimension_semantics<parallel>], iteration_bounds = array<i64: 1>, scalar_prefetch = 0 : i64, scratch_operands = 0 : i64, tpu.core_type = #tpu.core_type<tc>, window_params = [{transform_indices = @transform_0, window_bounds = array<i64: 32, 64>}, {pipeline_mode = #tpu.pipeline_mode<synchronous>, transform_indices = @transform_1, window_bounds = array<i64: 64, 128>}, {pipeline_mode = #tpu.pipeline_mode<synchronous>, transform_indices = @transform_2, window_bounds = array<i64: 1, 128>}, {transform_indices = @transform_3, window_bounds = array<i64: 32, 128>}]} {
    %c0 = arith.constant 0 : index
    %c0_0 = arith.constant 0 : index
    %0 = vector.load %arg1[%c0, %c0_0] : memref<32x64xbf16, #tpu.memory_space<vmem>>, vector<32x64xbf16>
    %c0_1 = arith.constant 0 : index
    %c0_2 = arith.constant 0 : index
    %1 = vector.load %arg2[%c0_1, %c0_2] : memref<64x128xbf16, #tpu.memory_space<vmem>>, vector<64x128xbf16>
    %cst = arith.constant dense<0.000000e+00> : vector<32x128xf32>
    %2 = tpu.matmul %0, %1, %cst {dimension_numbers = #tpu.dot_dimension_numbers<[1], [0], [0], [1], [0, 0, 1, 1], [], []>} : vector<32x64xbf16>, vector<64x128xbf16>, vector<32x128xf32> -> vector<32x128xf32>
    %c0_3 = arith.constant 0 : index
    %c0_4 = arith.constant 0 : index
    %3 = vector.load %arg3[%c0_3, %c0_4] : memref<1x128xf32, #tpu.memory_space<vmem>>, vector<1x128xf32>
    %4 = vector.broadcast %3 : vector<1x128xf32> to vector<32x128xf32>
    %5 = arith.addf %2, %4 : vector<32x128xf32>
    %c0_5 = arith.constant 0 : index
    %c0_6 = arith.constant 0 : index
    %6 = vector.load %arg4[%c0_5, %c0_6] : memref<32x128xf32, #tpu.memory_space<vmem>>, vector<32x128xf32>
    tpu.vector_store %arg4[%c0_5, %c0_6], %5 {strides = array<i32>} : memref<32x128xf32, #tpu.memory_space<vmem>>, vector<32x128xf32>,
    return
  }
  func.func @transform_0(%arg0: i32) -> (i32, i32) {
    %c0_i32 = arith.constant 0 : i32
    %c0_i32_0 = arith.constant 0 : i32
    return %arg0, %c0_i32 : i32, i32
  }
  func.func @transform_1(%arg0: i32) -> (i32, i32) {
    %c0_i32 = arith.constant 0 : i32
    %c0_i32_0 = arith.constant 0 : i32
    %c0_i32_1 = arith.constant 0 : i32
    return %c0_i32, %c0_i32_0 : i32, i32
  }
  func.func @transform_2(%arg0: i32) -> (i32, i32) {
    %c0_i32 = arith.constant 0 : i32
    %c0_i32_0 = arith.constant 0 : i32
    %c0_i32_1 = arith.constant 0 : i32
    return %c0_i32, %c0_i32_0 : i32, i32
  }
  func.func @transform_3(%arg0: i32) -> (i32, i32) {
    %c0_i32 = arith.constant 0 : i32
    %c0_i32_0 = arith.constant 0 : i32
    return %arg0, %c0_i32 : i32, i32
  }
}

</mosaic_0001>

<llo_original>
// kernel: patch_embed_forward.1
$region0: #{patch_embed_forward.1}
  #allocation0 [shape = 'u32[]', space=smem, size = 0x4, offset = 0x4, fixed_abs, tag = 'smem constant byte address 0x4 - core index']
  #allocation1 [shape = 'u32[144,128]{1,0:T(1,128)}', space=vmem, size = 0x12000, scoped, tag = 'internal scratch']
  %s0 = inlined_call_operand.vmem [shape: bf16[32,64], index: 0, kind: input, shape index: {}]
  %s1 = inlined_call_operand.vmem [shape: bf16[64,128], index: 1, kind: input, shape index: {}]
  %s2 = inlined_call_operand.vmem [shape: f32[1,128], index: 2, kind: input, shape index: {}]
  %s3 = inlined_call_operand.vmem [shape: f32[32,128], index: 3, kind: output, shape index: {}]
  %s4 = sld [smem:[#allocation0]]
  $region22: #{patch_embed_forward.1} parent=0
    _
  %s6 = ssub.s32 1, %s4
  %s7 = scalar_select 0, %s6, %s4
  // Predicated region
  $region2: #{patch_embed_forward.1} parent=0 // pred_check
    _
  $region3: #{patch_embed_forward.1} parent=0 // pred_check_branch
    %9 = sbr.rel (0) target = $region5
  $region4: #{patch_embed_forward.1} parent=0 // pred_region
    _
  $region5: #{patch_embed_forward.1} parent=0 // pred_fallthru
    _
  // Predicated region
  $region6: #{patch_embed_forward.1} parent=0 // pred_check
    _
  $region7: #{patch_embed_forward.1} parent=0 // pred_check_branch
    %11 = sbr.rel (0) target = $region9
  $region8: #{patch_embed_forward.1} parent=0 // pred_region
    _
  $region9: #{patch_embed_forward.1} parent=0 // pred_fallthru
    _
  // Predicated region
  $region10: #{patch_embed_forward.1} parent=0 // pred_check
    _
  $region11: #{patch_embed_forward.1} parent=0 // pred_check_branch
    %13 = sbr.rel (0) target = $region13
  $region12: #{patch_embed_forward.1} parent=0 // pred_region
    _
  $region13: #{patch_embed_forward.1} parent=0 // pred_fallthru
    _
  %v15 = vld [vmem:[%s0] sm:$0xf]
  %v16 = vld [vmem:[%s0 + $0x4] sm:$0xf]
  %v17 = vld [vmem:[%s0 + $0x8] sm:$0xf]
  %v18 = vld [vmem:[%s0 + $0xc] sm:$0xf]
  %v19 = vld [vmem:[%s1] sm:$0xf]
  %v20 = vld [vmem:[%s1 + $0x4] sm:$0xf]
  %v21 = vld [vmem:[%s1 + $0x8] sm:$0xf]
  %v22 = vld [vmem:[%s1 + $0xc] sm:$0xf]
  %v23 = vld [vmem:[%s1 + $0x10] sm:$0xf]
  %v24 = vld [vmem:[%s1 + $0x14] sm:$0xf]
  %v25 = vld [vmem:[%s1 + $0x18] sm:$0xf]
  %v26 = vld [vmem:[%s1 + $0x1c] sm:$0xf]
  %v27 = vld [vmem:[%s2] sm:$0x1]
  %v29 = vlaneseq
  %v30 = vshrl.u32 %v29, 7
  %v31 = vsub.s32 0, %v30
  %v32 = vrot.slane %v27, %v31
  %v38 = vunpack.c.l.b16 %v15
  %v39 = vunpack.c.l.b16 %v16
  %v40 = vunpack.c.l.b16 %v17
  %v41 = vunpack.c.l.b16 %v18
  %v42 = vpack.c.b16 %v39, %v38
  %v43 = vpack.c.b16 %v41, %v40
  %v52 = vunpack.c.l.b16 %v19
  %v53 = vunpack.c.l.b16 %v20
  %v54 = vunpack.c.l.b16 %v21
  %v55 = vunpack.c.l.b16 %v22
  %v56 = vunpack.c.l.b16 %v23
  %v57 = vunpack.c.l.b16 %v24
  %v58 = vunpack.c.l.b16 %v25
  %v59 = vunpack.c.l.b16 %v26
  %v60 = vpack.c.b16 %v53, %v52
  %v61 = vpack.c.b16 %v55, %v54
  %v62 = vpack.c.b16 %v57, %v56
  %v63 = vpack.c.b16 %v59, %v58
  %vm68 = vcmask 523264
  %v70 = vsel %vm68, %v42, 0
  %v73 = vsel %vm68, %v43, 0
  %75 = vmatprep.subr.bf16.mxu0 0
  %76 = vmatpush1.bf16.msra.mxu0 %v60
  %77 = vmatprep.subr.bf16.mxu0 0
  %78 = vmatpush1.bf16.msra.mxu0 %v61
  %79 = vmatprep.subr.bf16.mxu0 0
  %80 = vmatpush1.bf16.msra.mxu0 %v62
  %81 = vmatprep.subr.bf16.mxu0 0
  %82 = vmatpush1.bf16.msra.mxu0 %v63
  %83 = vmatprep.subr.bf16.mxu0 0
  %84 = vmatpush1.bf16.msra.mxu0 0
  %85 = vmatprep.subr.bf16.mxu0 0
  %86 = vmatpush1.bf16.msra.mxu0 0
  %87 = vmatprep.subr.bf16.mxu0 0
  %88 = vmatpush1.bf16.msra.mxu0 0
  %89 = vmatprep.subr.bf16.mxu0 0
  %90 = vmatpush1.bf16.msra.mxu0 0
  %91 = vmatprep.subr.bf16.mxu0 0
  %92 = vmatpush1.bf16.msra.mxu0 0
  %93 = vmatprep.subr.bf16.mxu0 0
  %94 = vmatpush1.bf16.msra.mxu0 0
  %95 = vmatprep.subr.bf16.mxu0 0
  %96 = vmatpush1.bf16.msra.mxu0 0
  %97 = vmatprep.subr.bf16.mxu0 0
  %98 = vmatpush1.bf16.msra.mxu0 0
  %99 = vmatprep.subr.bf16.mxu0 0
  %100 = vmatpush1.bf16.msra.mxu0 0
  %101 = vmatprep.subr.bf16.mxu0 0
  %102 = vmatpush1.bf16.msra.mxu0 0
  %103 = vmatprep.subr.bf16.mxu0 0
  %104 = vmatpush1.bf16.msra.mxu0 0
  %105 = vmatprep.subr.bf16.mxu0 0
  %106 = vmatpush1.bf16.msra.mxu0 0
  %107 = vmatprep.mubr.bf16.mxu0 0
  %108 = vmatmul.mubr.bf16.gmra.mrb[0].mxu0 %v70
  %v109 = vpop.f32.mrb[0].mxu0
  %v110 = vadd.f32 %v32, %v109
  %v111 = vpop.f32.mrb[0].mxu0
  %v112 = vpop.f32.mrb[0].mxu0
  %v113 = vadd.f32 %v32, %v112
  %v114 = vpop.f32.mrb[0].mxu0
  %115 = vmatprep.mubr.bf16.mxu0 0
  %116 = vmatmul.mubr.bf16.gmra.mrb[0].mxu0 %v73
  %v117 = vpop.f32.mrb[0].mxu0
  %v118 = vadd.f32 %v32, %v117
  %v119 = vpop.f32.mrb[0].mxu0
  %v120 = vpop.f32.mrb[0].mxu0
  %v121 = vadd.f32 %v32, %v120
  %v122 = vpop.f32.mrb[0].mxu0
  %123 = vdwg.mxu0
  %124 = vst [vmem:[%s3] sm:$0xff] %v110
  %125 = vst [vmem:[%s3 + $0x8] sm:$0xff] %v113
  %126 = vst [vmem:[%s3 + $0x10] sm:$0xff] %v118
  %127 = vst [vmem:[%s3 + $0x18] sm:$0xff] %v121
  // Predicated region
  $region14: #{patch_embed_forward.1} parent=0 // pred_check
    _
  $region15: #{patch_embed_forward.1} parent=0 // pred_check_branch
    %129 = sbr.rel (0) target = $region17
  $region16: #{patch_embed_forward.1} parent=0 // pred_region
    _
  $region17: #{patch_embed_forward.1} parent=0 // pred_fallthru
    _
  // Predicated region
  $region18: #{patch_embed_forward.1} parent=0 // pred_check
    _
  $region19: #{patch_embed_forward.1} parent=0 // pred_check_branch
    %131 = sbr.rel (0) target = $region21
  $region20: #{patch_embed_forward.1} parent=0 // pred_region
    _
  $region21: #{patch_embed_forward.1} parent=0 // pred_fallthru
    _

</llo_original>
